<compile_context>
chip_gen: v5e
topology: v5e:2x2
jax: 0.10.0
libtpu: 0.0.40
codegen_flags: <defaults>
</compile_context>

<pallas_src>
from functools import partial

import numpy as np
import jax
import jax.numpy as jnp
from jax.experimental import pallas as pl
from jax.experimental.pallas import tpu as pltpu


def _round_up(x: int, m: int) -> int:
    return ((x + m - 1) // m) * m


def _num_tensorcores_per_chip() -> int:
    """Best-effort detection of dual-TensorCore chips (v7x). Defaults to 1."""
    try:
        kind = jax.devices()[0].device_kind.lower()
        if "v7" in kind:
            return 2
    except Exception:
        pass
    return 1


def encoder_kernel(x_ref, wfc_ref, bfc_ref, whead_ref, bhead_ref, out_ref,
                   *, compute_dtype):
    """One row-tile of the encoder forward pass.

    x_ref     : (TM, K)     input rows in their native dtype (f32)
    wfc_ref   : (K, Hp)     fc weight, transposed + hidden-padded (compute dtype)
    bfc_ref   : (1, Hp)     fc bias (f32, zero in padded columns)
    whead_ref : (Hp, 2*O)   fused [z_mean | z_log_var] weights (compute dtype)
    bhead_ref : (1, 2*O)    fused biases (f32)
    out_ref   : (TM, 2*O)   fused output (f32)
    """
    # On-chip cast (no wrapper-side bf16 materialization of x); the VPU cast
    # hides under the streaming DMA.
    x = x_ref[...].astype(compute_dtype)
    # fc + tanh: MXU matmul with f32 accumulation; bias add & tanh in f32.
    y = jnp.tanh(
        jnp.dot(x, wfc_ref[...], preferred_element_type=jnp.float32)
        + bfc_ref[...]
    )
    # Single fused head matmul: z_mean and z_log_var share one MXU pass and
    # one store.
    out_ref[...] = (
        jnp.dot(y.astype(whead_ref.dtype), whead_ref[...],
                preferred_element_type=jnp.float32)
        + bhead_ref[...]
    ).astype(out_ref.dtype)


def _prep_params(params, compute_dtype):
    """Pad hidden dim to a lane-dense multiple of 128, fuse the two heads,
    and cast the matmul operands to the compute dtype (biases stay f32)."""
    wfc_t, bfc, wzm_t, bzm, wzv_t, bzv = params
    K, Hid = wfc_t.shape
    O = wzm_t.shape[1]
    Hp = max(128, _round_up(Hid, 128))

    wfc_p = jnp.zeros((K, Hp), jnp.float32).at[:, :Hid].set(wfc_t)
    bfc_p = jnp.zeros((1, Hp), jnp.float32).at[:, :Hid].set(bfc)
    whead = (jnp.zeros((Hp, 2 * O), jnp.float32)
             .at[:Hid, :O].set(wzm_t)
             .at[:Hid, O:].set(wzv_t))
    bhead = jnp.concatenate([bzm, bzv], axis=1)           # (1, 2*O), f32

    return (wfc_p.astype(compute_dtype), bfc_p,
            whead.astype(compute_dtype), bhead, Hp, O)


def _select_tile_m(M: int, requested: int) -> int:
    """Row-tile selection.

    * Big tiles amortize the ~0.35 us/step pipeline overhead (mem-bound
      roofline argument), so on single-TC chips (v5e/v6e) we take the
      requested tile uncapped.
    * On dual-TC chips (v7x) cap at ~M/4 so each TensorCore gets >= 2 grid
      steps and can double-buffer its x stream.
    * Small inputs get a single tile covering all rows (rounded to the
      8-row sublane granule so the block shape satisfies (8,128) tiling).
    """
    if M <= requested:
        return max(8, _round_up(M, 8))
    tile_m = max(8, _round_up(requested, 8))
    if _num_tensorcores_per_chip() > 1:
        per_core = max(8, _round_up(pl.cdiv(M, 4), 16))
        tile_m = min(tile_m, max(512, per_core))
    return tile_m


@partial(jax.jit, static_argnames=("tile_m", "compute_dtype"))
def _encoder_forward_impl(x, params, tile_m, compute_dtype):
    B, C = x.shape[0], x.shape[1]
    K = int(np.prod(x.shape[2:]))        # H*W (fc input features)
    M = B * C

    wfc_p, bfc_p, whead, bhead, Hp, O = _prep_params(params, compute_dtype)

    tile_m = _select_tile_m(M, int(tile_m))
    grid = (pl.cdiv(M, tile_m),)         # ragged last block masked by Pallas

    # Stream x in its native dtype (no wrapper-side cast, no full-array pad).
    xf = x.reshape(M, K)

    w_itemsize = jnp.dtype(compute_dtype).itemsize
    cost = pl.CostEstimate(
        flops=2 * M * (K * Hp + Hp * 2 * O),
        transcendentals=M * Hp,
        bytes_accessed=(
            M * K * xf.dtype.itemsize                     # x stream (f32)
            + (wfc_p.size + whead.size) * w_itemsize      # weights
            + (bfc_p.size + bhead.size) * 4               # biases (f32)
            + M * 2 * O * 4                               # fused output (f32)
        ),
    )

    out = pl.pallas_call(
        partial(encoder_kernel, compute_dtype=compute_dtype),
        out_shape=jax.ShapeDtypeStruct((M, 2 * O), jnp.float32),
        grid=grid,
        in_specs=[
            pl.BlockSpec((tile_m, K), lambda i: (i, 0)),   # x rows (streamed)
            pl.BlockSpec((K, Hp), lambda i: (0, 0)),       # fc weight (resident)
            pl.BlockSpec((1, Hp), lambda i: (0, 0)),       # fc bias
            pl.BlockSpec((Hp, 2 * O), lambda i: (0, 0)),   # fused head weight
            pl.BlockSpec((1, 2 * O), lambda i: (0, 0)),    # fused head bias
        ],
        out_specs=pl.BlockSpec((tile_m, 2 * O), lambda i: (i, 0)),
        compiler_params=pltpu.CompilerParams(
            dimension_semantics=("parallel",),
        ),
        cost_estimate=cost,
    )(xf, wfc_p, bfc_p, whead, bhead)

    z_mean = out[:, :O].reshape(B, C, O)
    z_log_var = out[:, O:].reshape(B, C, O)
    return z_mean, z_log_var


def encoder_forward(x, params, *, tile_m=2048, compute_dtype=jnp.bfloat16):
    """x: (B, C, H, W) float32.  Returns (z_mean, z_log_var): (B, C, out).

    Note: the default path runs the matmuls in bf16 with f32 accumulation
    (intentional, small deviation from the f32 PyTorch reference); pass
    compute_dtype=jnp.float32 for bit-accurate-ish math.
    """
    return _encoder_forward_impl(x, params, tile_m=int(tile_m),
                                 compute_dtype=compute_dtype)


def init_params(key, in_features, hidden, out_channels):
    """Deterministic synthetic parameters (PyTorch Linear shapes, transposed
    to (in, out) so the kernel computes x @ W + b)."""
    k1, k2, k3, k4, k5, k6 = jax.random.split(key, 6)
    s_fc = 1.0 / np.sqrt(in_features)
    s_h = 1.0 / np.sqrt(hidden)
    wfc_t = jax.random.uniform(k1, (in_features, hidden), jnp.float32, -s_fc, s_fc)
    bfc = jax.random.uniform(k2, (1, hidden), jnp.float32, -s_fc, s_fc)
    wzm_t = jax.random.uniform(k3, (hidden, out_channels), jnp.float32, -s_h, s_h)
    bzm = jax.random.uniform(k4, (1, out_channels), jnp.float32, -s_h, s_h)
    wzv_t = jax.random.uniform(k5, (hidden, out_channels), jnp.float32, -s_h, s_h)
    bzv = jax.random.uniform(k6, (1, out_channels), jnp.float32, -s_h, s_h)
    return wfc_t, bfc, wzm_t, bzm, wzv_t, bzv


def reference_forward(x, params):
    """Plain-JAX f32 reference matching the PyTorch module math."""
    wfc_t, bfc, wzm_t, bzm, wzv_t, bzv = params
    B, C = x.shape[0], x.shape[1]
    y = x.reshape(B, C, -1)
    y = jnp.tanh(y @ wfc_t + bfc[0])
    return y @ wzm_t + bzm[0], y @ wzv_t + bzv[0]


if __name__ == "__main__":
    # Shapes consistent with the module:
    #   x: (B=2, C=4, H=16, W=16)  ->  in_shape = (4, 16, 16)
    #   fc input features = 16*16 = 256, hidden = 64, out_channels = 8
    B, C, Himg, Wimg = 2, 4, 16, 16
    HIDDEN = 64
    OUT_CHANNELS = 8

    key = jax.random.PRNGKey(0)
    kx, kp, kx2 = jax.random.split(key, 3)
    x = jax.random.normal(kx, (B, C, Himg, Wimg), dtype=jnp.float32)
    params = init_params(kp, Himg * Wimg, HIDDEN, OUT_CHANNELS)

    zm_ref, zlv_ref = reference_forward(x, params)

    # f32 path: tight check of kernel structure (padding, fusion, tiling).
    zm32, zlv32 = encoder_forward(x, params, compute_dtype=jnp.float32)
    jax.block_until_ready((zm32, zlv32))
    np.testing.assert_allclose(np.asarray(zm32), np.asarray(zm_ref),
                               rtol=1e-5, atol=1e-5)
    np.testing.assert_allclose(np.asarray(zlv32), np.asarray(zlv_ref),
                               rtol=1e-5, atol=1e-5)

    # bf16 fast path (default): looser tolerance for the low-precision matmuls.
    z_mean, z_log_var = encoder_forward(x, params)
    jax.block_until_ready((z_mean, z_log_var))
    np.testing.assert_allclose(np.asarray(z_mean), np.asarray(zm_ref),
                               rtol=3e-2, atol=3e-2)
    np.testing.assert_allclose(np.asarray(z_log_var), np.asarray(zlv_ref),
                               rtol=3e-2, atol=3e-2)

    # Ragged-M / multi-step grid check (M=15 rows, tile_m=8 -> 2 grid steps,
    # last block half out-of-bounds): exercises the cdiv grid + masked writes.
    x2 = jax.random.normal(kx2, (3, 5, Himg, Wimg), dtype=jnp.float32)
    zm2_ref, zlv2_ref = reference_forward(x2, params)
    zm2, zlv2 = encoder_forward(x2, params, tile_m=8, compute_dtype=jnp.float32)
    jax.block_until_ready((zm2, zlv2))
    np.testing.assert_allclose(np.asarray(zm2), np.asarray(zm2_ref),
                               rtol=1e-5, atol=1e-5)
    np.testing.assert_allclose(np.asarray(zlv2), np.asarray(zlv2_ref),
                               rtol=1e-5, atol=1e-5)

    print("KERNEL_OK")
</pallas_src>

<mosaic_0001>
module attributes {stable_mosaic.version = 11 : i64} {
  func.func @encoder_kernel(%arg0: i32, %arg1: memref<8x256xf32, #tpu.memory_space<vmem>>, %arg2: memref<256x128xf32, #tpu.memory_space<vmem>>, %arg3: memref<1x128xf32, #tpu.memory_space<vmem>>, %arg4: memref<128x16xf32, #tpu.memory_space<vmem>>, %arg5: memref<1x16xf32, #tpu.memory_space<vmem>>, %arg6: memref<8x16xf32, #tpu.memory_space<vmem>>) attributes {dimension_semantics = [#tpu.dimension_semantics<parallel>], iteration_bounds = array<i64: 1>, scalar_prefetch = 0 : i64, scratch_operands = 0 : i64, tpu.core_type = #tpu.core_type<tc>, window_params = [{transform_indices = @transform_0, window_bounds = array<i64: 8, 256>}, {pipeline_mode = #tpu.pipeline_mode<synchronous>, transform_indices = @transform_1, window_bounds = array<i64: 256, 128>}, {pipeline_mode = #tpu.pipeline_mode<synchronous>, transform_indices = @transform_2, window_bounds = array<i64: 1, 128>}, {pipeline_mode = #tpu.pipeline_mode<synchronous>, transform_indices = @transform_3, window_bounds = array<i64: 128, 16>}, {pipeline_mode = #tpu.pipeline_mode<synchronous>, transform_indices = @transform_4, window_bounds = array<i64: 1, 16>}, {transform_indices = @transform_5, window_bounds = array<i64: 8, 16>}]} {
    %c0 = arith.constant 0 : index
    %c0_0 = arith.constant 0 : index
    %0 = vector.load %arg1[%c0, %c0_0] : memref<8x256xf32, #tpu.memory_space<vmem>>, vector<8x256xf32>
    %c0_1 = arith.constant 0 : index
    %c0_2 = arith.constant 0 : index
    %1 = vector.load %arg2[%c0_1, %c0_2] : memref<256x128xf32, #tpu.memory_space<vmem>>, vector<256x128xf32>
    %cst = arith.constant dense<0.000000e+00> : vector<8x128xf32>
    %2 = tpu.matmul %0, %1, %cst {dimension_numbers = #tpu.dot_dimension_numbers<[1], [0], [0], [1], [0, 0, 1, 1], [], []>} : vector<8x256xf32>, vector<256x128xf32>, vector<8x128xf32> -> vector<8x128xf32>
    %c0_3 = arith.constant 0 : index
    %c0_4 = arith.constant 0 : index
    %3 = vector.load %arg3[%c0_3, %c0_4] : memref<1x128xf32, #tpu.memory_space<vmem>>, vector<1x128xf32>
    %4 = vector.broadcast %3 : vector<1x128xf32> to vector<8x128xf32>
    %5 = arith.addf %2, %4 : vector<8x128xf32>
    %6 = math.tanh %5 : vector<8x128xf32>
    %c0_5 = arith.constant 0 : index
    %c0_6 = arith.constant 0 : index
    %7 = vector.load %arg4[%c0_5, %c0_6] : memref<128x16xf32, #tpu.memory_space<vmem>>, vector<128x16xf32>
    %cst_7 = arith.constant dense<0.000000e+00> : vector<8x16xf32>
    %8 = tpu.matmul %6, %7, %cst_7 {dimension_numbers = #tpu.dot_dimension_numbers<[1], [0], [0], [1], [0, 0, 1, 1], [], []>} : vector<8x128xf32>, vector<128x16xf32>, vector<8x16xf32> -> vector<8x16xf32>
    %c0_8 = arith.constant 0 : index
    %c0_9 = arith.constant 0 : index
    %9 = vector.load %arg5[%c0_8, %c0_9] : memref<1x16xf32, #tpu.memory_space<vmem>>, vector<1x16xf32>
    %10 = vector.broadcast %9 : vector<1x16xf32> to vector<8x16xf32>
    %11 = arith.addf %8, %10 : vector<8x16xf32>
    %c0_10 = arith.constant 0 : index
    %c0_11 = arith.constant 0 : index
    %12 = vector.load %arg6[%c0_10, %c0_11] : memref<8x16xf32, #tpu.memory_space<vmem>>, vector<8x16xf32>
    tpu.vector_store %arg6[%c0_10, %c0_11], %11 {strides = array<i32>} : memref<8x16xf32, #tpu.memory_space<vmem>>, vector<8x16xf32>,
    return
  }
  func.func @transform_0(%arg0: i32) -> (i32, i32) {
    %c0_i32 = arith.constant 0 : i32
    %c0_i32_0 = arith.constant 0 : i32
    return %arg0, %c0_i32 : i32, i32
  }
  func.func @transform_1(%arg0: i32) -> (i32, i32) {
    %c0_i32 = arith.constant 0 : i32
    %c0_i32_0 = arith.constant 0 : i32
    %c0_i32_1 = arith.constant 0 : i32
    return %c0_i32, %c0_i32_0 : i32, i32
  }
  func.func @transform_2(%arg0: i32) -> (i32, i32) {
    %c0_i32 = arith.constant 0 : i32
    %c0_i32_0 = arith.constant 0 : i32
    %c0_i32_1 = arith.constant 0 : i32
    return %c0_i32, %c0_i32_0 : i32, i32
  }
  func.func @transform_3(%arg0: i32) -> (i32, i32) {
    %c0_i32 = arith.constant 0 : i32
    %c0_i32_0 = arith.constant 0 : i32
    %c0_i32_1 = arith.constant 0 : i32
    return %c0_i32, %c0_i32_0 : i32, i32
  }
  func.func @transform_4(%arg0: i32) -> (i32, i32) {
    %c0_i32 = arith.constant 0 : i32
    %c0_i32_0 = arith.constant 0 : i32
    %c0_i32_1 = arith.constant 0 : i32
    return %c0_i32, %c0_i32_0 : i32, i32
  }
  func.func @transform_5(%arg0: i32) -> (i32, i32) {
    %c0_i32 = arith.constant 0 : i32
    %c0_i32_0 = arith.constant 0 : i32
    return %arg0, %c0_i32 : i32, i32
  }
}

</mosaic_0001>

<llo_original>
// kernel: _encoder_forward_impl.1
$region0: #{_encoder_forward_impl.1}
  #allocation0 [shape = 'u32[]', space=smem, size = 0x4, offset = 0x4, fixed_abs, tag = 'smem constant byte address 0x4 - core index']
  #allocation1 [shape = 'u32[72,128]{1,0:T(1,128)}', space=vmem, size = 0x9000, scoped, tag = 'internal scratch']
  %s0 = inlined_call_operand.vmem [shape: f32[8,256], index: 0, kind: input, shape index: {}]
  %s1 = inlined_call_operand.vmem [shape: f32[256,128], index: 1, kind: input, shape index: {}]
  %s2 = inlined_call_operand.vmem [shape: f32[1,128], index: 2, kind: input, shape index: {}]
  %s3 = inlined_call_operand.vmem [shape: f32[128,16], index: 3, kind: input, shape index: {}]
  %s4 = inlined_call_operand.vmem [shape: f32[1,16], index: 4, kind: input, shape index: {}]
  %s5 = inlined_call_operand.vmem [shape: f32[8,16], index: 5, kind: output, shape index: {}]
  %s6 = sld [smem:[#allocation0]]
  $region30: #{_encoder_forward_impl.1} parent=0
    _
  %s8 = ssub.s32 1, %s6
  %s9 = scalar_select 0, %s8, %s6
  // Predicated region
  $region2: #{_encoder_forward_impl.1} parent=0 // pred_check
    _
  $region3: #{_encoder_forward_impl.1} parent=0 // pred_check_branch
    %11 = sbr.rel (0) target = $region5
  $region4: #{_encoder_forward_impl.1} parent=0 // pred_region
    _
  $region5: #{_encoder_forward_impl.1} parent=0 // pred_fallthru
    _
  // Predicated region
  $region6: #{_encoder_forward_impl.1} parent=0 // pred_check
    _
  $region7: #{_encoder_forward_impl.1} parent=0 // pred_check_branch
    %13 = sbr.rel (0) target = $region9
  $region8: #{_encoder_forward_impl.1} parent=0 // pred_region
    _
  $region9: #{_encoder_forward_impl.1} parent=0 // pred_fallthru
    _
  // Predicated region
  $region10: #{_encoder_forward_impl.1} parent=0 // pred_check
    _
  $region11: #{_encoder_forward_impl.1} parent=0 // pred_check_branch
    %15 = sbr.rel (0) target = $region13
  $region12: #{_encoder_forward_impl.1} parent=0 // pred_region
    _
  $region13: #{_encoder_forward_impl.1} parent=0 // pred_fallthru
    _
  // Predicated region
  $region14: #{_encoder_forward_impl.1} parent=0 // pred_check
    _
  $region15: #{_encoder_forward_impl.1} parent=0 // pred_check_branch
    %17 = sbr.rel (0) target = $region17
  $region16: #{_encoder_forward_impl.1} parent=0 // pred_region
    _
  $region17: #{_encoder_forward_impl.1} parent=0 // pred_fallthru
    _
  // Predicated region
  $region18: #{_encoder_forward_impl.1} parent=0 // pred_check
    _
  $region19: #{_encoder_forward_impl.1} parent=0 // pred_check_branch
    %19 = sbr.rel (0) target = $region21
  $region20: #{_encoder_forward_impl.1} parent=0 // pred_region
    _
  $region21: #{_encoder_forward_impl.1} parent=0 // pred_fallthru
    _
  %v20 = vld [vmem:[%s0] sm:$0xff]
  %v21 = vld [vmem:[%s0 + $0x8] sm:$0xff]
  %v22 = vld [vmem:[%s1] sm:$0xff]
  %v23 = vld [vmem:[%s1 + $0x8] sm:$0xff]
  %v24 = vld [vmem:[%s1 + $0x10] sm:$0xff]
  %v25 = vld [vmem:[%s1 + $0x18] sm:$0xff]
  %v26 = vld [vmem:[%s1 + $0x20] sm:$0xff]
  %v27 = vld [vmem:[%s1 + $0x28] sm:$0xff]
  %v28 = vld [vmem:[%s1 + $0x30] sm:$0xff]
  %v29 = vld [vmem:[%s1 + $0x38] sm:$0xff]
  %v30 = vld [vmem:[%s1 + $0x40] sm:$0xff]
  %v31 = vld [vmem:[%s1 + $0x48] sm:$0xff]
  %v32 = vld [vmem:[%s1 + $0x50] sm:$0xff]
  %v33 = vld [vmem:[%s1 + $0x58] sm:$0xff]
  %v34 = vld [vmem:[%s1 + $0x60] sm:$0xff]
  %v35 = vld [vmem:[%s1 + $0x68] sm:$0xff]
  %v36 = vld [vmem:[%s1 + $0x70] sm:$0xff]
  %v37 = vld [vmem:[%s1 + $0x78] sm:$0xff]
  %v38 = vld [vmem:[%s1 + $0x80] sm:$0xff]
  %v39 = vld [vmem:[%s1 + $0x88] sm:$0xff]
  %v40 = vld [vmem:[%s1 + $0x90] sm:$0xff]
  %v41 = vld [vmem:[%s1 + $0x98] sm:$0xff]
  %v42 = vld [vmem:[%s1 + $0xa0] sm:$0xff]
  %v43 = vld [vmem:[%s1 + $0xa8] sm:$0xff]
  %v44 = vld [vmem:[%s1 + $0xb0] sm:$0xff]
  %v45 = vld [vmem:[%s1 + $0xb8] sm:$0xff]
  %v46 = vld [vmem:[%s1 + $0xc0] sm:$0xff]
  %v47 = vld [vmem:[%s1 + $0xc8] sm:$0xff]
  %v48 = vld [vmem:[%s1 + $0xd0] sm:$0xff]
  %v49 = vld [vmem:[%s1 + $0xd8] sm:$0xff]
  %v50 = vld [vmem:[%s1 + $0xe0] sm:$0xff]
  %v51 = vld [vmem:[%s1 + $0xe8] sm:$0xff]
  %v52 = vld [vmem:[%s1 + $0xf0] sm:$0xff]
  %v53 = vld [vmem:[%s1 + $0xf8] sm:$0xff]
  %v54 = vld [vmem:[%s2] sm:$0x1]
  %v56 = vperm.slane %v54, 0
  %58 = vmatpush.msra.mxu0 %v37
  %59 = vmatpush.msra.mxu0 %v36
  %60 = vmatpush.msra.mxu0 %v35
  %61 = vmatpush.msra.mxu0 %v34
  %62 = vmatpush.msra.mxu0 %v33
  %63 = vmatpush.msra.mxu0 %v32
  %64 = vmatpush.msra.mxu0 %v31
  %65 = vmatpush.msra.mxu0 %v30
  %66 = vmatpush.msra.mxu0 %v29
  %67 = vmatpush.msra.mxu0 %v28
  %68 = vmatpush.msra.mxu0 %v27
  %69 = vmatpush.msra.mxu0 %v26
  %70 = vmatpush.msra.mxu0 %v25
  %71 = vmatpush.msra.mxu0 %v24
  %72 = vmatpush.msra.mxu0 %v23
  %73 = vmatpush.msra.mxu0 %v22
  %74 = vmatmul.f32.gmra.mxu0 %v20
  %v75 = vpop.f32.mrf.mxu0
  %v76 = vadd.f32 %v56, %v75
  %77 = vdwg.mxu0
  %78 = vmatpush.msra.mxu0 %v53
  %79 = vmatpush.msra.mxu0 %v52
  %80 = vmatpush.msra.mxu0 %v51
  %81 = vmatpush.msra.mxu0 %v50
  %82 = vmatpush.msra.mxu0 %v49
  %83 = vmatpush.msra.mxu0 %v48
  %84 = vmatpush.msra.mxu0 %v47
  %85 = vmatpush.msra.mxu0 %v46
  %86 = vmatpush.msra.mxu0 %v45
  %87 = vmatpush.msra.mxu0 %v44
  %88 = vmatpush.msra.mxu0 %v43
  %89 = vmatpush.msra.mxu0 %v42
  %90 = vmatpush.msra.mxu0 %v41
  %91 = vmatpush.msra.mxu0 %v40
  %92 = vmatpush.msra.mxu0 %v39
  %93 = vmatpush.msra.mxu0 %v38
  %94 = vmatmul.f32.gmra.mxu0 %v21
  %v95 = vpop.f32.mrf.mxu0
  %v96 = vadd.f32 %v76, %v95
  %97 = vdwg.mxu0
  %v98 = vtanh.pop %v96
  %v99 = vld [vmem:[%s3] sm:$0xff]
  %v100 = vld [vmem:[%s3 + $0x8] sm:$0xff]
  %v101 = vld [vmem:[%s3 + $0x10] sm:$0xff]
  %v102 = vld [vmem:[%s3 + $0x18] sm:$0xff]
  %v103 = vld [vmem:[%s3 + $0x20] sm:$0xff]
  %v104 = vld [vmem:[%s3 + $0x28] sm:$0xff]
  %v105 = vld [vmem:[%s3 + $0x30] sm:$0xff]
  %v106 = vld [vmem:[%s3 + $0x38] sm:$0xff]
  %v107 = vld [vmem:[%s3 + $0x40] sm:$0xff]
  %v108 = vld [vmem:[%s3 + $0x48] sm:$0xff]
  %v109 = vld [vmem:[%s3 + $0x50] sm:$0xff]
  %v110 = vld [vmem:[%s3 + $0x58] sm:$0xff]
  %v111 = vld [vmem:[%s3 + $0x60] sm:$0xff]
  %v112 = vld [vmem:[%s3 + $0x68] sm:$0xff]
  %v113 = vld [vmem:[%s3 + $0x70] sm:$0xff]
  %v114 = vld [vmem:[%s3 + $0x78] sm:$0xff]
  %v115 = vld [vmem:[%s4] sm:$0x1]
  %v117 = vperm.slane %v115, 0
  %119 = vmatpush.msra.mxu0 %v114
  %120 = vmatpush.msra.mxu0 %v113
  %121 = vmatpush.msra.mxu0 %v112
  %122 = vmatpush.msra.mxu0 %v111
  %123 = vmatpush.msra.mxu0 %v110
  %124 = vmatpush.msra.mxu0 %v109
  %125 = vmatpush.msra.mxu0 %v108
  %126 = vmatpush.msra.mxu0 %v107
  %127 = vmatpush.msra.mxu0 %v106
  %128 = vmatpush.msra.mxu0 %v105
  %129 = vmatpush.msra.mxu0 %v104
  %130 = vmatpush.msra.mxu0 %v103
  %131 = vmatpush.msra.mxu0 %v102
  %132 = vmatpush.msra.mxu0 %v101
  %133 = vmatpush.msra.mxu0 %v100
  %134 = vmatpush.msra.mxu0 %v99
  %135 = vmatmul.f32.gmra.mxu0 %v98
  %v136 = vpop.f32.mrf.mxu0
  %v137 = vadd.f32 %v117, %v136
  %138 = vdwg.mxu0
  %vm139 = vcmask 130048
  %140 = vst.msk [vmem:[%s5] sm:$0xff] %vm139, %v137
  // Predicated region
  $region22: #{_encoder_forward_impl.1} parent=0 // pred_check
    _
  $region23: #{_encoder_forward_impl.1} parent=0 // pred_check_branch
    %142 = sbr.rel (0) target = $region25
  $region24: #{_encoder_forward_impl.1} parent=0 // pred_region
    _
  $region25: #{_encoder_forward_impl.1} parent=0 // pred_fallthru
    _
  // Predicated region
  $region26: #{_encoder_forward_impl.1} parent=0 // pred_check
    _
  $region27: #{_encoder_forward_impl.1} parent=0 // pred_check_branch
    %144 = sbr.rel (0) target = $region29
  $region28: #{_encoder_forward_impl.1} parent=0 // pred_region
    _
  $region29: #{_encoder_forward_impl.1} parent=0 // pred_fallthru
    _

</llo_original>
